<compile_context>
chip_gen: v5e
topology: v5e:2x2
jax: 0.10.0
libtpu: 0.0.40
codegen_flags: <defaults>
</compile_context>

<pallas_src>
import jax
import jax.numpy as jnp
import numpy as np
from jax.experimental import pallas as pl
from jax.experimental.pallas import tpu as pltpu


def _cdiv(a, b):
    return -(-a // b)


# --------------------------------------------------------------------------------------
# Shared in-kernel math: Bahdanau attention + single-step GRU (PyTorch gate order r,z,n)
# --------------------------------------------------------------------------------------
def _attention_and_gru(emb_ref, h_ref, enc_ref, enc_att_ref, wa_h_ref, v_ref,
                       wih_e3_ref, wih_w3_ref, whh3_ref, bih3_ref, bhh3_ref):
    emb = emb_ref[...]                       # [B, E]   f32
    h = h_ref[...]                           # [B, H]   f32
    enc = enc_ref[...]                       # [B, S, 2H]  (possibly bf16; promoted below)
    enc_att = enc_att_ref[...]               # [B, S, H]   (enc @ W_a_enc + b_attn)

    # ---- attention: softmax_s( v . tanh(W_a_h h + (W_a_e enc_s + b_a)) ) ----
    h_att = jnp.dot(h, wa_h_ref[...], preferred_element_type=jnp.float32)   # [B, H]
    energy = jnp.tanh(h_att[:, None, :] + enc_att)                          # [B, S, H] f32
    # Small reductions stay on VPU/XLU at these sizes; route through the MXU (einsum)
    # only if S / 2H grow into the hundreds (negligible here vs the fc_out stream).
    scores = jnp.sum(energy * v_ref[...][None], axis=2)                     # [B, S]
    scores = scores - jnp.max(scores, axis=1, keepdims=True)
    e = jnp.exp(scores)
    att = e / jnp.sum(e, axis=1, keepdims=True)                             # [B, S]

    # ---- context vector (torch.bmm): weighted = att @ encoder_outs ----
    weighted = jnp.sum(att[:, :, None] * enc, axis=1)                       # [B, 2H] f32

    # ---- single-step GRU; per-gate weight stacks avoid lane-unaligned column slices ----
    def gi(g):
        return (jnp.dot(emb, wih_e3_ref[g], preferred_element_type=jnp.float32)
                + jnp.dot(weighted, wih_w3_ref[g], preferred_element_type=jnp.float32)
                + bih3_ref[g])
    def gh(g):
        return jnp.dot(h, whh3_ref[g], preferred_element_type=jnp.float32) + bhh3_ref[g]

    r = jax.nn.sigmoid(gi(0) + gh(0))
    z = jax.nn.sigmoid(gi(1) + gh(1))
    n = jnp.tanh(gi(2) + r * gh(2))
    h_new = (1.0 - z) * n + z * h                                           # [B, H]
    return h_new, att, weighted


# --------------------------------------------------------------------------------------
# Kernel A (unfused path, step 1): attention + GRU, small single-block kernel
# --------------------------------------------------------------------------------------
def attn_gru_kernel(emb_ref, h_ref, enc_ref, enc_att_ref, wa_h_ref, v_ref,
                    wih_e3_ref, wih_w3_ref, whh3_ref, bih3_ref, bhh3_ref,
                    hnew_ref, att_ref, wgt_ref):
    h_new, att, weighted = _attention_and_gru(
        emb_ref, h_ref, enc_ref, enc_att_ref, wa_h_ref, v_ref,
        wih_e3_ref, wih_w3_ref, whh3_ref, bih3_ref, bhh3_ref)
    hnew_ref[...] = h_new
    att_ref[...] = att            # lane-dense [B, S]; [B,1,S] reshape is wrapper-side
    wgt_ref[...] = weighted


# --------------------------------------------------------------------------------------
# Kernel B (unfused path, step 2): vocab projection fc_out, tiled/pipelined over V.
# fc weight is pre-split into three row blocks -> no feats concat anywhere.
# --------------------------------------------------------------------------------------
def fc_out_kernel(h_ref, w_ref, e_ref, wfc_h_ref, wfc_w_ref, wfc_e_ref, bfc_ref, pred_ref):
    wd = wfc_h_ref.dtype
    pred = (jnp.dot(h_ref[...].astype(wd), wfc_h_ref[...], preferred_element_type=jnp.float32)
            + jnp.dot(w_ref[...].astype(wd), wfc_w_ref[...], preferred_element_type=jnp.float32)
            + jnp.dot(e_ref[...].astype(wd), wfc_e_ref[...], preferred_element_type=jnp.float32)
            + bfc_ref[...])
    pred_ref[...] = pred.astype(pred_ref.dtype)


# --------------------------------------------------------------------------------------
# Kernel C (fused path): attention + GRU computed once at V-tile 0 into VMEM scratch,
# vocab projection for every V tile.  Single launch per decode step.
# --------------------------------------------------------------------------------------
def fused_decoder_kernel(emb_ref, h_ref, enc_ref, enc_att_ref, wa_h_ref, v_ref,
                         wih_e3_ref, wih_w3_ref, whh3_ref, bih3_ref, bhh3_ref,
                         wfc_h_ref, wfc_w_ref, wfc_e_ref, bfc_ref,
                         pred_ref, hnew_ref, att_ref,
                         h_scr, w_scr):
    @pl.when(pl.program_id(0) == 0)
    def _():
        h_new, att, weighted = _attention_and_gru(
            emb_ref, h_ref, enc_ref, enc_att_ref, wa_h_ref, v_ref,
            wih_e3_ref, wih_w3_ref, whh3_ref, bih3_ref, bhh3_ref)
        h_scr[...] = h_new
        w_scr[...] = weighted
        hnew_ref[...] = h_new
        att_ref[...] = att

    wd = wfc_h_ref.dtype
    pred = (jnp.dot(h_scr[...].astype(wd), wfc_h_ref[...], preferred_element_type=jnp.float32)
            + jnp.dot(w_scr[...].astype(wd), wfc_w_ref[...], preferred_element_type=jnp.float32)
            + jnp.dot(emb_ref[...].astype(wd), wfc_e_ref[...], preferred_element_type=jnp.float32)
            + bfc_ref[...])
    pred_ref[...] = pred.astype(pred_ref.dtype)


# --------------------------------------------------------------------------------------
# Tiling / VMEM helpers
# --------------------------------------------------------------------------------------
def _choose_vocab_tiling(V, F, wbytes, tv_max, vmem_budget_bytes):
    cols_needed = max(1, _cdiv(V, 128))
    max_cols = max(1, min(tv_max // 128, cols_needed))
    # Shrink the tile until multi-buffered weight blocks fit the per-core VMEM budget.
    # (v7x has only 64 MiB/TC; a tile validated on v5e/v6e's 128 MiB could otherwise OOM.)
    while max_cols > 1 and 3 * (F * max_cols * 128 * wbytes + max_cols * 128 * 4) > vmem_budget_bytes:
        max_cols -= 1
    n_tiles = _cdiv(cols_needed, max_cols)
    if n_tiles == 1 and cols_needed >= 2:
        n_tiles = 2          # give both v7x TensorCores work on the "parallel" V axis
    cols = _cdiv(cols_needed, n_tiles)
    tv = cols * 128
    Vp = n_tiles * tv
    return tv, Vp, n_tiles


def _weight_spec(shape, index_map, n_tiles):
    """Streamed-weight BlockSpec; triple-buffer when the V grid is long enough that
    exposed DMA between small-compute tiles matters."""
    if n_tiles >= 3:
        try:
            return pl.BlockSpec(shape, index_map, pipeline_mode=pl.Buffered(3))
        except (TypeError, AttributeError):   # older/newer API without pipeline_mode
            pass
    return pl.BlockSpec(shape, index_map)


def _fc_vmem_limit(B, F, tv, wbytes, n_tiles, extra_bytes=0):
    nb = 3 if n_tiles >= 3 else 2
    need = (nb * (F * tv * wbytes + tv * 4)     # streamed weight + bias blocks
            + 2 * B * tv * 4                    # output block (double-buffered)
            + 2 * B * F * 4                     # resident activation inputs
            + extra_bytes
            + (2 << 20))                        # Mosaic internal scratch headroom
    # derived, not hard-coded: stays well under v7x's 64 MiB per-TC VMEM
    return int(min(max(need, 8 << 20), 40 << 20))


# --------------------------------------------------------------------------------------
# One-time parameter preparation (hoisted out of the per-step path)
# --------------------------------------------------------------------------------------
def prepare_params(params, weights_dtype=jnp.bfloat16, tv_max=2048,
                   fc_vmem_budget_bytes=34 << 20):
    """Pre-transpose / split / pad weights ONCE.  bfloat16 streamed weights (default)
    ~halve the per-step HBM traffic of the mem-bound fc_out matmul; use
    weights_dtype=jnp.float32 when bit-tight numerics are required."""
    H = params["w_hh"].shape[1]
    E = params["emb_table"].shape[1]
    V = params["w_fc"].shape[0]
    H2 = 2 * H
    F = 3 * H + E
    wd = weights_dtype
    wbytes = jnp.dtype(wd).itemsize

    tv, Vp, n_tiles = _choose_vocab_tiling(V, F, wbytes, tv_max, fc_vmem_budget_bytes)

    wa = params["w_attn"]                       # [H, 3H]   (cols: [hidden ; enc])
    w_ih = params["w_ih"]                       # [3H, E+2H] rows stacked (r, z, n)
    w_hh = params["w_hh"]                       # [3H, H]
    w_fc = params["w_fc"]                       # [V, H+2H+E] cols: [out ; weighted ; emb]

    gate = lambda w, g: w[g * H:(g + 1) * H]

    def pad_cols(w_t):                          # [rows, V] -> [rows, Vp] zero-padded
        return jnp.zeros((w_t.shape[0], Vp), wd).at[:, :V].set(w_t.astype(wd))

    return {
        "emb_table": params["emb_table"].astype(jnp.float32),
        "wa_h":  wa[:, :H].T.astype(wd),                     # [H, H]
        "wa_e":  wa[:, H:].T.astype(jnp.float32),            # [2H, H] (per-sequence precompute)
        "ba":    params["b_attn"][None, :].astype(jnp.float32),
        "v":     params["v"].astype(jnp.float32),            # [1, H]
        # per-gate weight stacks (r, z, n) -> no lane-unaligned gate slices in-kernel
        "wih_e3": jnp.stack([gate(w_ih, g)[:, :E].T for g in range(3)]).astype(wd),  # [3, E, H]
        "wih_w3": jnp.stack([gate(w_ih, g)[:, E:].T for g in range(3)]).astype(wd),  # [3, 2H, H]
        "whh3":   jnp.stack([gate(w_hh, g).T for g in range(3)]).astype(wd),         # [3, H, H]
        "bih3":   params["b_ih"].reshape(3, 1, H).astype(jnp.float32),
        "bhh3":   params["b_hh"].reshape(3, 1, H).astype(jnp.float32),
        # fc weight split into three row blocks (kills the feats concat)
        "wfc_h_t": pad_cols(w_fc[:, :H].T),                   # [H, Vp]
        "wfc_w_t": pad_cols(w_fc[:, H:H + H2].T),             # [2H, Vp]
        "wfc_e_t": pad_cols(w_fc[:, H + H2:].T),              # [E, Vp]
        # pad columns masked with a large negative so padded [B, Vp] logits are directly
        # consumable by softmax/argmax (no per-step [:, :V] slice needed downstream)
        "bfc":   jnp.full((1, Vp), -1e30, jnp.float32).at[:, :V].set(
                     params["b_fc"].astype(jnp.float32)),
        "dims":  {"H": H, "E": E, "H2": H2, "F": F, "V": V, "Vp": Vp,
                  "tv": tv, "n_tiles": n_tiles},
    }


def precompute_encoder_context(prep, encoder_outs, state_dtype=None):
    """Per-sequence (loop-invariant across decode steps): permute to batch-major and
    project the encoder outputs for attention, folding b_attn in once.  The result is
    stored in the streamed-weight dtype (bf16 by default) to halve kernel 1's per-step
    re-fetch of loop-invariant encoder state."""
    if state_dtype is None:
        state_dtype = prep["wa_h"].dtype
    enc_bm = jnp.transpose(encoder_outs, (1, 0, 2)).astype(jnp.float32)      # [B, S, 2H]
    B, S, H2 = enc_bm.shape
    H = prep["dims"]["H"]
    enc_att = (jnp.dot(enc_bm.reshape(B * S, H2), prep["wa_e"],
                       preferred_element_type=jnp.float32).reshape(B, S, H)
               + prep["ba"][None])                                           # [B, S, H]
    return enc_bm.astype(state_dtype), enc_att.astype(state_dtype)


# --------------------------------------------------------------------------------------
# Per-step forward (matches Decoder_GRU.forward in eval mode)
# --------------------------------------------------------------------------------------
def decoder_gru_step(prep, input_ids, hidden, enc_bm, enc_att, *,
                     fuse=True, return_padded=False):
    """fuse=True  : single fused kernel (best for v5e/v6e single-TC; one launch/step).
       fuse=False : two kernels with a "parallel" V axis (megacore-sharded on v7x).
       return_padded=True returns [B, Vp] logits (pad columns masked to -1e30) and
       skips the per-step [:, :V] slice copy."""
    d = prep["dims"]
    H, E, H2, F = d["H"], d["E"], d["H2"], d["F"]
    V, Vp, tv, n_tiles = d["V"], d["Vp"], d["tv"], d["n_tiles"]
    B, S, _ = enc_bm.shape

    # glue: embedding lookup (input.unsqueeze(0) -> embedding -> squeeze)
    emb = jnp.take(prep["emb_table"], input_ids, axis=0).astype(jnp.float32)   # [B, E]
    # TODO(synk): nn.Dropout is identity here (eval / p=0); no stochastic mask applied.

    wbytes = jnp.dtype(prep["wfc_h_t"].dtype).itemsize
    enc_bytes = int(enc_bm.size * jnp.dtype(enc_bm.dtype).itemsize
                    + enc_att.size * jnp.dtype(enc_att.dtype).itemsize)
    fc_ce = pl.CostEstimate(
        flops=int(2 * B * F * Vp), transcendentals=0,
        bytes_accessed=int(F * Vp * wbytes + Vp * 4 + B * F * 4 + B * Vp * 4))

    fc_w_specs = [_weight_spec((H, tv), lambda j: (0, j), n_tiles),
                  _weight_spec((H2, tv), lambda j: (0, j), n_tiles),
                  _weight_spec((E, tv), lambda j: (0, j), n_tiles),
                  pl.BlockSpec((1, tv), lambda j: (0, j))]
    fc_weights = (prep["wfc_h_t"], prep["wfc_w_t"], prep["wfc_e_t"], prep["bfc"])
    small_args = (emb, hidden, enc_bm, enc_att, prep["wa_h"], prep["v"],
                  prep["wih_e3"], prep["wih_w3"], prep["whh3"], prep["bih3"], prep["bhh3"])

    if fuse:
        # ---- single fused kernel: attn+GRU at tile 0 (scratch), fc for every V tile ----
        small_specs = [pl.BlockSpec((B, E), lambda j: (0, 0)),
                       pl.BlockSpec((B, H), lambda j: (0, 0)),
                       pl.BlockSpec((B, S, H2), lambda j: (0, 0, 0)),
                       pl.BlockSpec((B, S, H), lambda j: (0, 0, 0)),
                       pl.BlockSpec((H, H), lambda j: (0, 0)),
                       pl.BlockSpec((1, H), lambda j: (0, 0)),
                       pl.BlockSpec((3, E, H), lambda j: (0, 0, 0)),
                       pl.BlockSpec((3, H2, H), lambda j: (0, 0, 0)),
                       pl.BlockSpec((3, H, H), lambda j: (0, 0, 0)),
                       pl.BlockSpec((3, 1, H), lambda j: (0, 0, 0)),
                       pl.BlockSpec((3, 1, H), lambda j: (0, 0, 0))]
        vlim = _fc_vmem_limit(B, F, tv, wbytes, n_tiles, extra_bytes=2 * enc_bytes + (1 << 20))
        fused_ce = pl.CostEstimate(
            flops=int(2 * B * F * Vp + 2 * B * S * 3 * H + 2 * B * 3 * H * (E + 3 * H)),
            transcendentals=int(B * (S * H + S + 5 * H)),
            bytes_accessed=int(F * Vp * wbytes + Vp * 4 + enc_bytes + B * Vp * 4))
        pred_p, h_new, att = pl.pallas_call(
            fused_decoder_kernel,
            out_shape=(jax.ShapeDtypeStruct((B, Vp), jnp.float32),
                       jax.ShapeDtypeStruct((B, H), jnp.float32),
                       jax.ShapeDtypeStruct((B, S), jnp.float32)),
            grid=(n_tiles,),
            in_specs=small_specs + fc_w_specs,
            out_specs=(pl.BlockSpec((B, tv), lambda j: (0, j)),
                       pl.BlockSpec((B, H), lambda j: (0, 0)),
                       pl.BlockSpec((B, S), lambda j: (0, 0))),
            scratch_shapes=[pltpu.VMEM((B, H), jnp.float32),
                            pltpu.VMEM((B, H2), jnp.float32)],
            compiler_params=pltpu.CompilerParams(
                dimension_semantics=("arbitrary",),     # sequential: tile 0 fills scratch
                vmem_limit_bytes=vlim),
            cost_estimate=fused_ce,
        )(*small_args, *fc_weights)
    else:
        # ---- kernel A: attention + GRU (small, single VMEM block) ----
        vmem = lambda: pl.BlockSpec(memory_space=pltpu.MemorySpace.VMEM)
        k1_lim = int(min(max(2 * enc_bytes + (4 << 20), 8 << 20), 40 << 20))
        h_new, att, weighted = pl.pallas_call(
            attn_gru_kernel,
            out_shape=(jax.ShapeDtypeStruct((B, H), jnp.float32),
                       jax.ShapeDtypeStruct((B, S), jnp.float32),
                       jax.ShapeDtypeStruct((B, H2), jnp.float32)),
            in_specs=[vmem() for _ in range(11)],
            out_specs=(vmem(), vmem(), vmem()),
            compiler_params=pltpu.CompilerParams(vmem_limit_bytes=k1_lim),
        )(*small_args)

        # ---- kernel B: vocab projection, tiled over V, megacore-parallel on v7x ----
        vlim = _fc_vmem_limit(B, F, tv, wbytes, n_tiles)
        pred_p = pl.pallas_call(
            fc_out_kernel,
            out_shape=jax.ShapeDtypeStruct((B, Vp), jnp.float32),
            grid=(n_tiles,),
            in_specs=[pl.BlockSpec((B, H), lambda j: (0, 0)),
                      pl.BlockSpec((B, H2), lambda j: (0, 0)),
                      pl.BlockSpec((B, E), lambda j: (0, 0))] + fc_w_specs,
            out_specs=pl.BlockSpec((B, tv), lambda j: (0, j)),
            compiler_params=pltpu.CompilerParams(
                dimension_semantics=("parallel",),
                vmem_limit_bytes=vlim),
            cost_estimate=fc_ce,
        )(h_new, weighted, emb, *fc_weights)

    pred = pred_p if return_padded else pred_p[:, :V]
    return pred, h_new, att[:, None, :]


def decoder_gru_forward(params, input_ids, hidden, encoder_outs,
                        weights_dtype=jnp.bfloat16, fuse=True):
    """Convenience single-call wrapper; in a real decode loop call prepare_params once
    and precompute_encoder_context once per sequence."""
    prep = prepare_params(params, weights_dtype=weights_dtype)
    enc_bm, enc_att = precompute_encoder_context(prep, encoder_outs)
    return decoder_gru_step(prep, input_ids, hidden, enc_bm, enc_att, fuse=fuse)


# ---------------- pure-JAX reference (faithful to the PyTorch code) ----------------
def decoder_gru_reference(params, input_ids, hidden, encoder_outs):
    emb = params["emb_table"][input_ids]                          # [B, E]
    S, B, H2 = encoder_outs.shape
    H = hidden.shape[1]
    h_rep = jnp.broadcast_to(hidden[:, None, :], (B, S, H))
    enc_bm = jnp.transpose(encoder_outs, (1, 0, 2))               # [B, S, 2H]
    cat = jnp.concatenate([h_rep, enc_bm], axis=2)                # [B, S, 3H]
    energy = jnp.tanh(cat @ params["w_attn"].T + params["b_attn"])
    scores = jnp.squeeze(energy @ params["v"].T, axis=2)          # [B, S]
    att = jax.nn.softmax(scores, axis=1)
    weighted = jnp.einsum("bs,bsk->bk", att, enc_bm)              # [B, 2H]
    x = jnp.concatenate([emb, weighted], axis=1)
    gi = x @ params["w_ih"].T + params["b_ih"]
    gh = hidden @ params["w_hh"].T + params["b_hh"]
    r = jax.nn.sigmoid(gi[:, :H] + gh[:, :H])
    z = jax.nn.sigmoid(gi[:, H:2 * H] + gh[:, H:2 * H])
    n = jnp.tanh(gi[:, 2 * H:] + r * gh[:, 2 * H:])
    h_new = (1.0 - z) * n + z * hidden
    pred = jnp.concatenate([h_new, weighted, emb], axis=1) @ params["w_fc"].T + params["b_fc"]
    return pred, h_new, att[:, None, :]


def init_params(key, V, E, H):
    ks = jax.random.split(key, 10)
    s = 0.1
    f32 = jnp.float32
    return {
        "emb_table": jax.random.normal(ks[0], (V, E), f32) * s,
        "w_attn":    jax.random.normal(ks[1], (H, 3 * H), f32) * s,      # Linear(2H+H -> H)
        "b_attn":    jax.random.normal(ks[2], (H,), f32) * s,
        "v":         jax.random.normal(ks[3], (1, H), f32) * s,          # Linear(H -> 1, no bias)
        "w_ih":      jax.random.normal(ks[4], (3 * H, E + 2 * H), f32) * s,
        "b_ih":      jax.random.normal(ks[5], (3 * H,), f32) * s,
        "w_hh":      jax.random.normal(ks[6], (3 * H, H), f32) * s,
        "b_hh":      jax.random.normal(ks[7], (3 * H,), f32) * s,
        "w_fc":      jax.random.normal(ks[8], (V, 2 * H + H + E), f32) * s,
        "b_fc":      jax.random.normal(ks[9], (V,), f32) * s,
    }


if __name__ == "__main__":
    V, E, H = 320, 16, 32    # output_dim (vocab), emb_dim, hidden_dim
    B, S = 2, 8              # batch, src_len

    params = init_params(jax.random.PRNGKey(1), V, E, H)

    k_in, k_h, k_enc = jax.random.split(jax.random.PRNGKey(0), 3)
    input_ids = jax.random.randint(k_in, (B,), 0, V)                      # decoder input tokens
    hidden = jax.random.normal(k_h, (B, H), jnp.float32)                  # decoder hidden state
    encoder_outs = jax.random.normal(k_enc, (S, B, 2 * H), jnp.float32)   # bidirectional enc outs

    pred_r, h_r, att_r = decoder_gru_reference(params, input_ids, hidden, encoder_outs)

    configs = [
        # (name, prepare_params kwargs, step kwargs, tolerance)
        ("f32 / two-kernel (v7x megacore path)",
         dict(weights_dtype=jnp.float32), dict(fuse=False), 2e-4),
        ("f32 / fused / tv=128 (multi-tile, buffered weights)",
         dict(weights_dtype=jnp.float32, tv_max=128), dict(fuse=True), 2e-4),
        ("bf16 weights+state / fused (default, low-DMA)",
         dict(), dict(), 4e-2),
    ]

    for name, pkw, skw, tol in configs:
        prep = prepare_params(params, **pkw)
        enc_bm, enc_att = precompute_encoder_context(prep, encoder_outs)
        pred, h_new, att = jax.block_until_ready(
            decoder_gru_step(prep, input_ids, hidden, enc_bm, enc_att, **skw))
        assert pred.shape == (B, V) and h_new.shape == (B, H) and att.shape == (B, 1, S), name
        np.testing.assert_allclose(np.asarray(pred), np.asarray(pred_r),
                                   rtol=tol, atol=tol, err_msg=name)
        np.testing.assert_allclose(np.asarray(h_new), np.asarray(h_r),
                                   rtol=tol, atol=tol, err_msg=name)
        np.testing.assert_allclose(np.asarray(att), np.asarray(att_r),
                                   rtol=tol, atol=tol, err_msg=name)

    print("KERNEL_OK")
</pallas_src>

<mosaic_0001>
module attributes {stable_mosaic.version = 11 : i64} {
  func.func @attn_gru_kernel(%arg0: memref<2x16xf32, #tpu.memory_space<vmem>>, %arg1: memref<2x32xf32, #tpu.memory_space<vmem>>, %arg2: memref<2x8x64xf32, #tpu.memory_space<vmem>>, %arg3: memref<2x8x32xf32, #tpu.memory_space<vmem>>, %arg4: memref<32x32xf32, #tpu.memory_space<vmem>>, %arg5: memref<1x32xf32, #tpu.memory_space<vmem>>, %arg6: memref<3x16x32xf32, #tpu.memory_space<vmem>>, %arg7: memref<3x64x32xf32, #tpu.memory_space<vmem>>, %arg8: memref<3x32x32xf32, #tpu.memory_space<vmem>>, %arg9: memref<3x1x32xf32, #tpu.memory_space<vmem>>, %arg10: memref<3x1x32xf32, #tpu.memory_space<vmem>>, %arg11: memref<2x32xf32, #tpu.memory_space<vmem>>, %arg12: memref<2x8xf32, #tpu.memory_space<vmem>>, %arg13: memref<2x64xf32, #tpu.memory_space<vmem>>) attributes {dimension_semantics = [], scalar_prefetch = 0 : i64, scratch_operands = 0 : i64, tpu.core_type = #tpu.core_type<tc>} {
    %c0 = arith.constant 0 : index
    %c0_0 = arith.constant 0 : index
    %0 = vector.load %arg0[%c0, %c0_0] : memref<2x16xf32, #tpu.memory_space<vmem>>, vector<2x16xf32>
    %c0_1 = arith.constant 0 : index
    %c0_2 = arith.constant 0 : index
    %1 = vector.load %arg1[%c0_1, %c0_2] : memref<2x32xf32, #tpu.memory_space<vmem>>, vector<2x32xf32>
    %c0_3 = arith.constant 0 : index
    %c0_4 = arith.constant 0 : index
    %c0_5 = arith.constant 0 : index
    %2 = vector.load %arg2[%c0_3, %c0_4, %c0_5] : memref<2x8x64xf32, #tpu.memory_space<vmem>>, vector<2x8x64xf32>
    %c0_6 = arith.constant 0 : index
    %c0_7 = arith.constant 0 : index
    %c0_8 = arith.constant 0 : index
    %3 = vector.load %arg3[%c0_6, %c0_7, %c0_8] : memref<2x8x32xf32, #tpu.memory_space<vmem>>, vector<2x8x32xf32>
    %c0_9 = arith.constant 0 : index
    %c0_10 = arith.constant 0 : index
    %4 = vector.load %arg4[%c0_9, %c0_10] : memref<32x32xf32, #tpu.memory_space<vmem>>, vector<32x32xf32>
    %cst = arith.constant dense<0.000000e+00> : vector<2x32xf32>
    %5 = tpu.matmul %1, %4, %cst {dimension_numbers = #tpu.dot_dimension_numbers<[1], [0], [0], [1], [0, 0, 1, 1], [], []>} : vector<2x32xf32>, vector<32x32xf32>, vector<2x32xf32> -> vector<2x32xf32>
    %6 = vector.shape_cast %5 : vector<2x32xf32> to vector<2x1x32xf32>
    %7 = vector.broadcast %6 : vector<2x1x32xf32> to vector<2x8x32xf32>
    %8 = arith.addf %7, %3 : vector<2x8x32xf32>
    %9 = math.tanh %8 : vector<2x8x32xf32>
    %c0_11 = arith.constant 0 : index
    %c0_12 = arith.constant 0 : index
    %10 = vector.load %arg5[%c0_11, %c0_12] : memref<1x32xf32, #tpu.memory_space<vmem>>, vector<1x32xf32>
    %11 = vector.shape_cast %10 : vector<1x32xf32> to vector<1x1x32xf32>
    %12 = vector.broadcast %11 : vector<1x1x32xf32> to vector<2x8x32xf32>
    %13 = arith.mulf %9, %12 : vector<2x8x32xf32>
    %cst_13 = arith.constant dense<0.000000e+00> : vector<2x8xf32>
    %14 = vector.multi_reduction <add>, %13, %cst_13 [2] : vector<2x8x32xf32> to vector<2x8xf32>
    %cst_14 = arith.constant dense<0xFF800000> : vector<2xf32>
    %15 = vector.multi_reduction <maximumf>, %14, %cst_14 [1] : vector<2x8xf32> to vector<2xf32>
    %16 = vector.shape_cast %15 : vector<2xf32> to vector<2x1xf32>
    %17 = vector.broadcast %16 : vector<2x1xf32> to vector<2x8xf32>
    %18 = arith.subf %14, %17 : vector<2x8xf32>
    %19 = math.exp %18 : vector<2x8xf32>
    %cst_15 = arith.constant dense<0.000000e+00> : vector<2xf32>
    %20 = vector.multi_reduction <add>, %19, %cst_15 [1] : vector<2x8xf32> to vector<2xf32>
    %21 = vector.shape_cast %20 : vector<2xf32> to vector<2x1xf32>
    %22 = vector.broadcast %21 : vector<2x1xf32> to vector<2x8xf32>
    %23 = arith.divf %19, %22 : vector<2x8xf32>
    %24 = vector.shape_cast %23 : vector<2x8xf32> to vector<2x8x1xf32>
    %25 = vector.broadcast %24 : vector<2x8x1xf32> to vector<2x8x64xf32>
    %26 = arith.mulf %25, %2 : vector<2x8x64xf32>
    %cst_16 = arith.constant dense<0.000000e+00> : vector<2x64xf32>
    %27 = vector.multi_reduction <add>, %26, %cst_16 [1] : vector<2x8x64xf32> to vector<2x64xf32>
    %c0_17 = arith.constant 0 : index
    %c0_18 = arith.constant 0 : index
    %c0_19 = arith.constant 0 : index
    %28 = vector.load %arg6[%c0_17, %c0_18, %c0_19] : memref<3x16x32xf32, #tpu.memory_space<vmem>>, vector<1x16x32xf32>
    %29 = vector.shape_cast %28 : vector<1x16x32xf32> to vector<16x32xf32>
    %cst_20 = arith.constant dense<0.000000e+00> : vector<2x32xf32>
    %30 = tpu.matmul %0, %29, %cst_20 {dimension_numbers = #tpu.dot_dimension_numbers<[1], [0], [0], [1], [0, 0, 1, 1], [], []>} : vector<2x16xf32>, vector<16x32xf32>, vector<2x32xf32> -> vector<2x32xf32>
    %c0_21 = arith.constant 0 : index
    %c0_22 = arith.constant 0 : index
    %c0_23 = arith.constant 0 : index
    %31 = vector.load %arg7[%c0_21, %c0_22, %c0_23] : memref<3x64x32xf32, #tpu.memory_space<vmem>>, vector<1x64x32xf32>
    %32 = vector.shape_cast %31 : vector<1x64x32xf32> to vector<64x32xf32>
    %cst_24 = arith.constant dense<0.000000e+00> : vector<2x32xf32>
    %33 = tpu.matmul %27, %32, %cst_24 {dimension_numbers = #tpu.dot_dimension_numbers<[1], [0], [0], [1], [0, 0, 1, 1], [], []>} : vector<2x64xf32>, vector<64x32xf32>, vector<2x32xf32> -> vector<2x32xf32>
    %34 = arith.addf %30, %33 : vector<2x32xf32>
    %c0_25 = arith.constant 0 : index
    %c0_26 = arith.constant 0 : index
    %c0_27 = arith.constant 0 : index
    %35 = vector.load %arg9[%c0_25, %c0_26, %c0_27] : memref<3x1x32xf32, #tpu.memory_space<vmem>>, vector<1x1x32xf32>
    %36 = vector.shape_cast %35 : vector<1x1x32xf32> to vector<1x32xf32>
    %37 = vector.broadcast %36 : vector<1x32xf32> to vector<2x32xf32>
    %38 = arith.addf %34, %37 : vector<2x32xf32>
    %c0_28 = arith.constant 0 : index
    %c0_29 = arith.constant 0 : index
    %c0_30 = arith.constant 0 : index
    %39 = vector.load %arg8[%c0_28, %c0_29, %c0_30] : memref<3x32x32xf32, #tpu.memory_space<vmem>>, vector<1x32x32xf32>
    %40 = vector.shape_cast %39 : vector<1x32x32xf32> to vector<32x32xf32>
    %cst_31 = arith.constant dense<0.000000e+00> : vector<2x32xf32>
    %41 = tpu.matmul %1, %40, %cst_31 {dimension_numbers = #tpu.dot_dimension_numbers<[1], [0], [0], [1], [0, 0, 1, 1], [], []>} : vector<2x32xf32>, vector<32x32xf32>, vector<2x32xf32> -> vector<2x32xf32>
    %c0_32 = arith.constant 0 : index
    %c0_33 = arith.constant 0 : index
    %c0_34 = arith.constant 0 : index
    %42 = vector.load %arg10[%c0_32, %c0_33, %c0_34] : memref<3x1x32xf32, #tpu.memory_space<vmem>>, vector<1x1x32xf32>
    %43 = vector.shape_cast %42 : vector<1x1x32xf32> to vector<1x32xf32>
    %44 = vector.broadcast %43 : vector<1x32xf32> to vector<2x32xf32>
    %45 = arith.addf %41, %44 : vector<2x32xf32>
    %46 = arith.addf %38, %45 : vector<2x32xf32>
    %47 = arith.negf %46 : vector<2x32xf32>
    %48 = math.exp %47 : vector<2x32xf32>
    %cst_35 = arith.constant 1.000000e+00 : f32
    %49 = vector.broadcast %cst_35 : f32 to vector<2x32xf32>
    %50 = arith.addf %49, %48 : vector<2x32xf32>
    %51 = arith.divf %49, %50 : vector<2x32xf32>
    %c1 = arith.constant 1 : index
    %c0_36 = arith.constant 0 : index
    %c0_37 = arith.constant 0 : index
    %52 = vector.load %arg6[%c1, %c0_36, %c0_37] : memref<3x16x32xf32, #tpu.memory_space<vmem>>, vector<1x16x32xf32>
    %53 = vector.shape_cast %52 : vector<1x16x32xf32> to vector<16x32xf32>
    %cst_38 = arith.constant dense<0.000000e+00> : vector<2x32xf32>
    %54 = tpu.matmul %0, %53, %cst_38 {dimension_numbers = #tpu.dot_dimension_numbers<[1], [0], [0], [1], [0, 0, 1, 1], [], []>} : vector<2x16xf32>, vector<16x32xf32>, vector<2x32xf32> -> vector<2x32xf32>
    %c1_39 = arith.constant 1 : index
    %c0_40 = arith.constant 0 : index
    %c0_41 = arith.constant 0 : index
    %55 = vector.load %arg7[%c1_39, %c0_40, %c0_41] : memref<3x64x32xf32, #tpu.memory_space<vmem>>, vector<1x64x32xf32>
    %56 = vector.shape_cast %55 : vector<1x64x32xf32> to vector<64x32xf32>
    %cst_42 = arith.constant dense<0.000000e+00> : vector<2x32xf32>
    %57 = tpu.matmul %27, %56, %cst_42 {dimension_numbers = #tpu.dot_dimension_numbers<[1], [0], [0], [1], [0, 0, 1, 1], [], []>} : vector<2x64xf32>, vector<64x32xf32>, vector<2x32xf32> -> vector<2x32xf32>
    %58 = arith.addf %54, %57 : vector<2x32xf32>
    %c1_43 = arith.constant 1 : index
    %c0_44 = arith.constant 0 : index
    %c0_45 = arith.constant 0 : index
    %59 = vector.load %arg9[%c1_43, %c0_44, %c0_45] : memref<3x1x32xf32, #tpu.memory_space<vmem>>, vector<1x1x32xf32>
    %60 = vector.shape_cast %59 : vector<1x1x32xf32> to vector<1x32xf32>
    %61 = vector.broadcast %60 : vector<1x32xf32> to vector<2x32xf32>
    %62 = arith.addf %58, %61 : vector<2x32xf32>
    %c1_46 = arith.constant 1 : index
    %c0_47 = arith.constant 0 : index
    %c0_48 = arith.constant 0 : index
    %63 = vector.load %arg8[%c1_46, %c0_47, %c0_48] : memref<3x32x32xf32, #tpu.memory_space<vmem>>, vector<1x32x32xf32>
    %64 = vector.shape_cast %63 : vector<1x32x32xf32> to vector<32x32xf32>
    %cst_49 = arith.constant dense<0.000000e+00> : vector<2x32xf32>
    %65 = tpu.matmul %1, %64, %cst_49 {dimension_numbers = #tpu.dot_dimension_numbers<[1], [0], [0], [1], [0, 0, 1, 1], [], []>} : vector<2x32xf32>, vector<32x32xf32>, vector<2x32xf32> -> vector<2x32xf32>
    %c1_50 = arith.constant 1 : index
    %c0_51 = arith.constant 0 : index
    %c0_52 = arith.constant 0 : index
    %66 = vector.load %arg10[%c1_50, %c0_51, %c0_52] : memref<3x1x32xf32, #tpu.memory_space<vmem>>, vector<1x1x32xf32>
    %67 = vector.shape_cast %66 : vector<1x1x32xf32> to vector<1x32xf32>
    %68 = vector.broadcast %67 : vector<1x32xf32> to vector<2x32xf32>
    %69 = arith.addf %65, %68 : vector<2x32xf32>
    %70 = arith.addf %62, %69 : vector<2x32xf32>
    %71 = arith.negf %70 : vector<2x32xf32>
    %72 = math.exp %71 : vector<2x32xf32>
    %cst_53 = arith.constant 1.000000e+00 : f32
    %73 = vector.broadcast %cst_53 : f32 to vector<2x32xf32>
    %74 = arith.addf %73, %72 : vector<2x32xf32>
    %75 = arith.divf %73, %74 : vector<2x32xf32>
    %c2 = arith.constant 2 : index
    %c0_54 = arith.constant 0 : index
    %c0_55 = arith.constant 0 : index
    %76 = vector.load %arg6[%c2, %c0_54, %c0_55] : memref<3x16x32xf32, #tpu.memory_space<vmem>>, vector<1x16x32xf32>
    %77 = vector.shape_cast %76 : vector<1x16x32xf32> to vector<16x32xf32>
    %cst_56 = arith.constant dense<0.000000e+00> : vector<2x32xf32>
    %78 = tpu.matmul %0, %77, %cst_56 {dimension_numbers = #tpu.dot_dimension_numbers<[1], [0], [0], [1], [0, 0, 1, 1], [], []>} : vector<2x16xf32>, vector<16x32xf32>, vector<2x32xf32> -> vector<2x32xf32>
    %c2_57 = arith.constant 2 : index
    %c0_58 = arith.constant 0 : index
    %c0_59 = arith.constant 0 : index
    %79 = vector.load %arg7[%c2_57, %c0_58, %c0_59] : memref<3x64x32xf32, #tpu.memory_space<vmem>>, vector<1x64x32xf32>
    %80 = vector.shape_cast %79 : vector<1x64x32xf32> to vector<64x32xf32>
    %cst_60 = arith.constant dense<0.000000e+00> : vector<2x32xf32>
    %81 = tpu.matmul %27, %80, %cst_60 {dimension_numbers = #tpu.dot_dimension_numbers<[1], [0], [0], [1], [0, 0, 1, 1], [], []>} : vector<2x64xf32>, vector<64x32xf32>, vector<2x32xf32> -> vector<2x32xf32>
    %82 = arith.addf %78, %81 : vector<2x32xf32>
    %c2_61 = arith.constant 2 : index
    %c0_62 = arith.constant 0 : index
    %c0_63 = arith.constant 0 : index
    %83 = vector.load %arg9[%c2_61, %c0_62, %c0_63] : memref<3x1x32xf32, #tpu.memory_space<vmem>>, vector<1x1x32xf32>
    %84 = vector.shape_cast %83 : vector<1x1x32xf32> to vector<1x32xf32>
    %85 = vector.broadcast %84 : vector<1x32xf32> to vector<2x32xf32>
    %86 = arith.addf %82, %85 : vector<2x32xf32>
    %c2_64 = arith.constant 2 : index
    %c0_65 = arith.constant 0 : index
    %c0_66 = arith.constant 0 : index
    %87 = vector.load %arg8[%c2_64, %c0_65, %c0_66] : memref<3x32x32xf32, #tpu.memory_space<vmem>>, vector<1x32x32xf32>
    %88 = vector.shape_cast %87 : vector<1x32x32xf32> to vector<32x32xf32>
    %cst_67 = arith.constant dense<0.000000e+00> : vector<2x32xf32>
    %89 = tpu.matmul %1, %88, %cst_67 {dimension_numbers = #tpu.dot_dimension_numbers<[1], [0], [0], [1], [0, 0, 1, 1], [], []>} : vector<2x32xf32>, vector<32x32xf32>, vector<2x32xf32> -> vector<2x32xf32>
    %c2_68 = arith.constant 2 : index
    %c0_69 = arith.constant 0 : index
    %c0_70 = arith.constant 0 : index
    %90 = vector.load %arg10[%c2_68, %c0_69, %c0_70] : memref<3x1x32xf32, #tpu.memory_space<vmem>>, vector<1x1x32xf32>
    %91 = vector.shape_cast %90 : vector<1x1x32xf32> to vector<1x32xf32>
    %92 = vector.broadcast %91 : vector<1x32xf32> to vector<2x32xf32>
    %93 = arith.addf %89, %92 : vector<2x32xf32>
    %94 = arith.mulf %51, %93 : vector<2x32xf32>
    %95 = arith.addf %86, %94 : vector<2x32xf32>
    %96 = math.tanh %95 : vector<2x32xf32>
    %cst_71 = arith.constant 1.000000e+00 : f32
    %97 = vector.broadcast %cst_71 : f32 to vector<2x32xf32>
    %98 = arith.subf %97, %75 : vector<2x32xf32>
    %99 = arith.mulf %98, %96 : vector<2x32xf32>
    %100 = arith.mulf %75, %1 : vector<2x32xf32>
    %101 = arith.addf %99, %100 : vector<2x32xf32>
    %c0_72 = arith.constant 0 : index
    %c0_73 = arith.constant 0 : index
    %102 = vector.load %arg11[%c0_72, %c0_73] : memref<2x32xf32, #tpu.memory_space<vmem>>, vector<2x32xf32>
    tpu.vector_store %arg11[%c0_72, %c0_73], %101 {strides = array<i32>} : memref<2x32xf32, #tpu.memory_space<vmem>>, vector<2x32xf32>,
    %c0_74 = arith.constant 0 : index
    %c0_75 = arith.constant 0 : index
    %103 = vector.load %arg12[%c0_74, %c0_75] : memref<2x8xf32, #tpu.memory_space<vmem>>, vector<2x8xf32>
    tpu.vector_store %arg12[%c0_74, %c0_75], %23 {strides = array<i32>} : memref<2x8xf32, #tpu.memory_space<vmem>>, vector<2x8xf32>,
    %c0_76 = arith.constant 0 : index
    %c0_77 = arith.constant 0 : index
    %104 = vector.load %arg13[%c0_76, %c0_77] : memref<2x64xf32, #tpu.memory_space<vmem>>, vector<2x64xf32>
    tpu.vector_store %arg13[%c0_76, %c0_77], %27 {strides = array<i32>} : memref<2x64xf32, #tpu.memory_space<vmem>>, vector<2x64xf32>,
    return
  }
}

</mosaic_0001>

<llo_original>
// kernel: tpu_custom_call.1
$region0: #{tpu_custom_call.1}
  #allocation0 [shape = 'u32[]', space=smem, size = 0x4, offset = 0x4, fixed_abs, tag = 'smem constant byte address 0x4 - core index']
  #allocation1 [shape = 'u32[72,128]{1,0:T(1,128)}', space=vmem, size = 0x9000, scoped, tag = 'internal scratch']
  %s0 = inlined_call_operand.vmem [shape: f32[2,16], index: 0, kind: input, shape index: {}]
  %s1 = inlined_call_operand.vmem [shape: f32[2,32], index: 1, kind: input, shape index: {}]
  %s2 = inlined_call_operand.vmem [shape: f32[2,8,64], index: 2, kind: input, shape index: {}]
  %s3 = inlined_call_operand.vmem [shape: f32[2,8,32], index: 3, kind: input, shape index: {}]
  %s4 = inlined_call_operand.vmem [shape: f32[32,32], index: 4, kind: input, shape index: {}]
  %s5 = inlined_call_operand.vmem [shape: f32[1,32], index: 5, kind: input, shape index: {}]
  %s6 = inlined_call_operand.vmem [shape: f32[3,16,32], index: 6, kind: input, shape index: {}]
  %s7 = inlined_call_operand.vmem [shape: f32[3,64,32], index: 7, kind: input, shape index: {}]
  %s8 = inlined_call_operand.vmem [shape: f32[3,32,32], index: 8, kind: input, shape index: {}]
  %s9 = inlined_call_operand.vmem [shape: f32[3,1,32], index: 9, kind: input, shape index: {}]
  %s10 = inlined_call_operand.vmem [shape: f32[3,1,32], index: 10, kind: input, shape index: {}]
  %s11 = inlined_call_operand.hbm [shape: f32[2,32], index: 11, kind: output, shape index: {0}]
  %s12 = inlined_call_operand.hbm [shape: f32[2,8], index: 12, kind: output, shape index: {1}]
  %s13 = inlined_call_operand.hbm [shape: f32[2,64], index: 13, kind: output, shape index: {2}]
  %14 = xla_tuple %s11, %s12, %s13
  %s15 = sld [smem:[#allocation0]]
  $region70: #{tpu_custom_call.1} parent=0
    _
  %s17 = ssub.s32 1, %s15
  %s18 = scalar_select 0, %s17, %s15
  $region1: #{tpu_custom_call.1} parent=0
    #allocation2 [shape = 'u8[1024]{0}', space=vmem, size = 0x400, scoped, tag = 'output window, operand 0, single buffered']
    #allocation3 [shape = 's32[1]{0}', space=sflag, size = 0x4, scoped, tag = 'scoped memory for tpu_custom_call.1']
    #allocation4 [shape = 'u8[1024]{0}', space=vmem, size = 0x400, scoped, tag = 'output window, operand 1, single buffered']
    #allocation5 [shape = 's32[1]{0}', space=sflag, size = 0x4, scoped, tag = 'scoped memory for tpu_custom_call.1']
    #allocation6 [shape = 'u8[1024]{0}', space=vmem, size = 0x400, scoped, tag = 'output window, operand 2, single buffered']
    %19 = vsyncpa [#allocation3], 0
    %20 = vsyncpa [#allocation5], 0
    // Predicated region
    $region2: #{tpu_custom_call.1} parent=1 // pred_check
      _
    $region3: #{tpu_custom_call.1} parent=1 // pred_check_branch
      %22 = sbr.rel (0) target = $region5
    $region4: #{tpu_custom_call.1} parent=1 // pred_region
      _
    $region5: #{tpu_custom_call.1} parent=1 // pred_fallthru
      _
    // Predicated region
    $region6: #{tpu_custom_call.1} parent=1 // pred_check
      _
    $region7: #{tpu_custom_call.1} parent=1 // pred_check_branch
      %24 = sbr.rel (0) target = $region9
    $region8: #{tpu_custom_call.1} parent=1 // pred_region
      _
    $region9: #{tpu_custom_call.1} parent=1 // pred_fallthru
      _
    // Predicated region
    $region10: #{tpu_custom_call.1} parent=1 // pred_check
      _
    $region11: #{tpu_custom_call.1} parent=1 // pred_check_branch
      %26 = sbr.rel (0) target = $region13
    $region12: #{tpu_custom_call.1} parent=1 // pred_region
      _
    $region13: #{tpu_custom_call.1} parent=1 // pred_fallthru
      _
    // Predicated region
    $region14: #{tpu_custom_call.1} parent=1 // pred_check
      _
    $region15: #{tpu_custom_call.1} parent=1 // pred_check_branch
      %28 = sbr.rel (0) target = $region17
    $region16: #{tpu_custom_call.1} parent=1 // pred_region
      _
    $region17: #{tpu_custom_call.1} parent=1 // pred_fallthru
      _
    // Predicated region
    $region18: #{tpu_custom_call.1} parent=1 // pred_check
      _
    $region19: #{tpu_custom_call.1} parent=1 // pred_check_branch
      %30 = sbr.rel (0) target = $region21
    $region20: #{tpu_custom_call.1} parent=1 // pred_region
      _
    $region21: #{tpu_custom_call.1} parent=1 // pred_fallthru
      _
    // Predicated region
    $region22: #{tpu_custom_call.1} parent=1 // pred_check
      _
    $region23: #{tpu_custom_call.1} parent=1 // pred_check_branch
      %32 = sbr.rel (0) target = $region25
    $region24: #{tpu_custom_call.1} parent=1 // pred_region
      _
    $region25: #{tpu_custom_call.1} parent=1 // pred_fallthru
      _
    // Predicated region
    $region26: #{tpu_custom_call.1} parent=1 // pred_check
      _
    $region27: #{tpu_custom_call.1} parent=1 // pred_check_branch
      %34 = sbr.rel (0) target = $region29
    $region28: #{tpu_custom_call.1} parent=1 // pred_region
      _
    $region29: #{tpu_custom_call.1} parent=1 // pred_fallthru
      _
    // Predicated region
    $region30: #{tpu_custom_call.1} parent=1 // pred_check
      _
    $region31: #{tpu_custom_call.1} parent=1 // pred_check_branch
      %36 = sbr.rel (0) target = $region33
    $region32: #{tpu_custom_call.1} parent=1 // pred_region
      _
    $region33: #{tpu_custom_call.1} parent=1 // pred_fallthru
      _
    // Predicated region
    $region34: #{tpu_custom_call.1} parent=1 // pred_check
      _
    $region35: #{tpu_custom_call.1} parent=1 // pred_check_branch
      %38 = sbr.rel (0) target = $region37
    $region36: #{tpu_custom_call.1} parent=1 // pred_region
      _
    $region37: #{tpu_custom_call.1} parent=1 // pred_fallthru
      _
    // Predicated region
    $region38: #{tpu_custom_call.1} parent=1 // pred_check
      _
    $region39: #{tpu_custom_call.1} parent=1 // pred_check_branch
      %40 = sbr.rel (0) target = $region41
    $region40: #{tpu_custom_call.1} parent=1 // pred_region
      _
    $region41: #{tpu_custom_call.1} parent=1 // pred_fallthru
      _
    // Predicated region
    $region42: #{tpu_custom_call.1} parent=1 // pred_check
      _
    $region43: #{tpu_custom_call.1} parent=1 // pred_check_branch
      %42 = sbr.rel (0) target = $region45
    $region44: #{tpu_custom_call.1} parent=1 // pred_region
      _
    $region45: #{tpu_custom_call.1} parent=1 // pred_fallthru
      _
    %v43 = vld [vmem:[%s0] sm:$0x3]
    %v44 = vld [vmem:[%s1] sm:$0x3]
    %v45 = vld [vmem:[%s2] sm:$0xff]
    %v46 = vld [vmem:[%s2 + $0x8] sm:$0xff]
    %v47 = vld [vmem:[%s3] sm:$0xff]
    %v48 = vld [vmem:[%s3 + $0x8] sm:$0xff]
    %v49 = vld [vmem:[%s4] sm:$0xff]
    %v50 = vld [vmem:[%s4 + $0x8] sm:$0xff]
    %v51 = vld [vmem:[%s4 + $0x10] sm:$0xff]
    %v52 = vld [vmem:[%s4 + $0x18] sm:$0xff]
    %vm53 = vcmask 261120
    %v55 = vsel %vm53, %v44, 0
    %57 = vmatpush.msra.mxu0 0.0
    %58 = vmatpush.msra.mxu0 0.0
    %59 = vmatpush.msra.mxu0 0.0
    %60 = vmatpush.msra.mxu0 0.0
    %61 = vmatpush.msra.mxu0 0.0
    %62 = vmatpush.msra.mxu0 0.0
    %63 = vmatpush.msra.mxu0 0.0
    %64 = vmatpush.msra.mxu0 0.0
    %65 = vmatpush.msra.mxu0 0.0
    %66 = vmatpush.msra.mxu0 0.0
    %67 = vmatpush.msra.mxu0 0.0
    %68 = vmatpush.msra.mxu0 0.0
    %69 = vmatpush.msra.mxu0 %v52
    %70 = vmatpush.msra.mxu0 %v51
    %71 = vmatpush.msra.mxu0 %v50
    %72 = vmatpush.msra.mxu0 %v49
    %73 = vmatmul.f32.gmra.mxu0 %v55
    %v74 = vpop.f32.mrf.mxu0
    %v75 = vadd.f32 0.0, %v74
    %76 = vdwg.mxu0
    %v78 = vrot.slane %v75, 1
    %v79 = vperm.slane %v75, 0
    %v80 = vperm.slane %v78, 0
    %v83 = vadd.f32 %v79, %v47
    %v84 = vadd.f32 %v80, %v48
    %v85 = vtanh.pop %v83
    %v86 = vtanh.pop %v84
    %v87 = vld [vmem:[%s5] sm:$0x1]
    %v89 = vperm.slane %v87, 0
    %v91 = vmul.f32 %v85, %v89
    %v92 = vmul.f32 %v86, %v89
    %v93 = vsel %vm53, %v91, 0.0
    %94 = vadd.xlane.f32.xlu0 %v93
    %v95 = vpop.xlane.xlu0 %94
    %v96 = vsel %vm53, %v92, 0.0
    %97 = vadd.xlane.f32.xlu0 %v96
    %v98 = vpop.xlane.xlu0 %97
    %v101 = vlaneseq
    %v102 = vand.u32 %v101, 127
    %v103 = vperm.slane %v95, %v102
    %v104 = vperm.slane %v98, %v102
    %vm105 = vcmask 1041409
    %v106 = vsel %vm105, %v104, %v103
    %vm108 = vcmask 58368
    %v109 = vsel %vm108, %v106, -inf
    %110 = vmax.xlane.f32.xlu0 %v109
    %v111 = vpop.xlane.xlu0 %110
    %v113 = vperm.slane %v111, 0
    %v114 = vperm.slane %v111, 1
    %v117 = vsub.f32 %v95, %v113
    %v118 = vsub.f32 %v98, %v114
    %v119 = vmul.f32 %v117, 1.442695
    %v120 = vpow.pop %v119
    %v121 = vmul.f32 %v118, 1.442695
    %v122 = vpow.pop %v121
    %125 = vset.pattern.permute.xlu0 0
    %126 = vperm.xlu0 %125, %v120
    %v127 = vpop.permute.xlu0 %126
    %128 = vset.pattern.permute.xlu0 0
    %129 = vperm.xlu0 %128, %v122
    %v130 = vpop.permute.xlu0 %129
    %v131 = vperm.slane %v127, %v102
    %v132 = vperm.slane %v130, %v102
    %v133 = vsel %vm105, %v132, %v131
    %v135 = vsel %vm108, %v133, 0.0
    %136 = vadd.xlane.f32.xlu0 %v135
    %v137 = vpop.xlane.xlu0 %136
    %v139 = vperm.slane %v137, 0
    %v140 = vperm.slane %v137, 1
    %v143 = vrcp.pop %v139
    %v144 = vmul.f32 %v139, %v143
    %v145 = vsub.f32 1.0, %v144
    %v146 = vmul.f32 %v143, %v145
    %v147 = vadd.f32 %v143, %v146
    %vm148 = vweird.f32 %v139
    %vm149 = vweird.f32 %v143
    %vm150 = vmor %vm148, %vm149
    %v151 = vsel %vm150, %v143, %v147
    %v152 = vand.u32 2147483647, %v139
    %vm153 = vcmp.eq.f32.partialorder %v152, 8.507059e+37
    %v154 = vand.u32 %v139, 2147483648
    %v155 = vor.u32 1.1754944e-38, %v154
    %v156 = vsel %vm153, %v155, %v151
    %v157 = vmul.f32 %v120, %v156
    %v158 = vrcp.pop %v140
    %v159 = vmul.f32 %v140, %v158
    %v160 = vsub.f32 1.0, %v159
    %v161 = vmul.f32 %v158, %v160
    %v162 = vadd.f32 %v158, %v161
    %vm163 = vweird.f32 %v140
    %vm164 = vweird.f32 %v158
    %vm165 = vmor %vm163, %vm164
    %v166 = vsel %vm165, %v158, %v162
    %v167 = vand.u32 2147483647, %v140
    %vm168 = vcmp.eq.f32.partialorder %v167, 8.507059e+37
    %v169 = vand.u32 %v140, 2147483648
    %v170 = vor.u32 1.1754944e-38, %v169
    %v171 = vsel %vm168, %v170, %v166
    %v172 = vmul.f32 %v122, %v171
    %174 = vset.pattern.permute.xlu0 0
    %175 = vperm.xlu0 %174, %v157
    %v176 = vpop.permute.xlu0 %175
    %179 = vset.pattern.permute.xlu0 0
    %180 = vperm.xlu0 %179, %v172
    %v181 = vpop.permute.xlu0 %180
    %v183 = vmul.f32 %v176, %v45
    %v184 = vmul.f32 %v181, %v46
    %vm185 = vcmask 523264
    %v186 = vsel %vm185, %v183, 0.0
    %v187 = vrot.slane %v186, 4
    %v188 = vadd.f32 %v186, %v187
    %v189 = vrot.slane %v188, 2
    %v190 = vadd.f32 %v188, %v189
    %v191 = vrot.slane %v190, 1
    %v192 = vadd.f32 %v190, %v191
    %v193 = vsel %vm185, %v184, 0.0
    %v194 = vrot.slane %v193, 4
    %v195 = vadd.f32 %v193, %v194
    %v196 = vrot.slane %v195, 2
    %v197 = vadd.f32 %v195, %v196
    %v198 = vrot.slane %v197, 1
    %v199 = vadd.f32 %v197, %v198
    %v200 = vld [vmem:[%s6] sm:$0xff]
    %v201 = vld [vmem:[%s6 + $0x8] sm:$0xff]
    %v202 = vld [vmem:[%s7] sm:$0xff]
    %v203 = vld [vmem:[%s7 + $0x8] sm:$0xff]
    %v204 = vld [vmem:[%s7 + $0x10] sm:$0xff]
    %v205 = vld [vmem:[%s7 + $0x18] sm:$0xff]
    %v206 = vld [vmem:[%s7 + $0x20] sm:$0xff]
    %v207 = vld [vmem:[%s7 + $0x28] sm:$0xff]
    %v208 = vld [vmem:[%s7 + $0x30] sm:$0xff]
    %v209 = vld [vmem:[%s7 + $0x38] sm:$0xff]
    %v212 = vsel %vm105, %v199, %v192
    %v213 = vsel %vm185, %v212, 0
    %215 = vmatpush.msra.mxu0 0.0
    %216 = vmatpush.msra.mxu0 0.0
    %217 = vmatpush.msra.mxu0 0.0
    %218 = vmatpush.msra.mxu0 0.0
    %219 = vmatpush.msra.mxu0 0.0
    %220 = vmatpush.msra.mxu0 0.0
    %221 = vmatpush.msra.mxu0 0.0
    %222 = vmatpush.msra.mxu0 0.0
    %223 = vmatpush.msra.mxu0 %v209
    %224 = vmatpush.msra.mxu0 %v208
    %225 = vmatpush.msra.mxu0 %v207
    %226 = vmatpush.msra.mxu0 %v206
    %227 = vmatpush.msra.mxu0 %v205
    %228 = vmatpush.msra.mxu0 %v204
    %229 = vmatpush.msra.mxu0 %v203
    %230 = vmatpush.msra.mxu0 %v202
    %231 = vmatmul.f32.gmra.mxu0 %v213
    %v232 = vpop.f32.mrf.mxu0
    %v233 = vadd.f32 0.0, %v232
    %234 = vdwg.mxu0
    %vm235 = vcmask 130048
    %v237 = vsel %vm235, %v43, 0
    %239 = vmatpush.msra.mxu0 0.0
    %240 = vmatpush.msra.mxu0 0.0
    %241 = vmatpush.msra.mxu0 0.0
    %242 = vmatpush.msra.mxu0 0.0
    %243 = vmatpush.msra.mxu0 0.0
    %244 = vmatpush.msra.mxu0 0.0
    %245 = vmatpush.msra.mxu0 0.0
    %246 = vmatpush.msra.mxu0 0.0
    %247 = vmatpush.msra.mxu0 0.0
    %248 = vmatpush.msra.mxu0 0.0
    %249 = vmatpush.msra.mxu0 0.0
    %250 = vmatpush.msra.mxu0 0.0
    %251 = vmatpush.msra.mxu0 0.0
    %252 = vmatpush.msra.mxu0 0.0
    %253 = vmatpush.msra.mxu0 %v201
    %254 = vmatpush.msra.mxu0 %v200
    %255 = vmatmul.f32.gmra.mxu0 %v237
    %v256 = vpop.f32.mrf.mxu0
    %v257 = vadd.f32 %v233, %v256
    %258 = vdwg.mxu0
    %v259 = vld [vmem:[%s9] sm:$0x1]
    %v261 = vperm.slane %v259, 0
    %v263 = vadd.f32 %v257, %v261
    %v264 = vld [vmem:[%s8] sm:$0xff]
    %v265 = vld [vmem:[%s8 + $0x8] sm:$0xff]
    %v266 = vld [vmem:[%s8 + $0x10] sm:$0xff]
    %v267 = vld [vmem:[%s8 + $0x18] sm:$0xff]
    %v268 = vld [vmem:[%s10] sm:$0x1]
    %v270 = vperm.slane %v268, 0
    %272 = vmatpush.msra.mxu0 0.0
    %273 = vmatpush.msra.mxu0 0.0
    %274 = vmatpush.msra.mxu0 0.0
    %275 = vmatpush.msra.mxu0 0.0
    %276 = vmatpush.msra.mxu0 0.0
    %277 = vmatpush.msra.mxu0 0.0
    %278 = vmatpush.msra.mxu0 0.0
    %279 = vmatpush.msra.mxu0 0.0
    %280 = vmatpush.msra.mxu0 0.0
    %281 = vmatpush.msra.mxu0 0.0
    %282 = vmatpush.msra.mxu0 0.0
    %283 = vmatpush.msra.mxu0 0.0
    %284 = vmatpush.msra.mxu0 %v267
    %285 = vmatpush.msra.mxu0 %v266
    %286 = vmatpush.msra.mxu0 %v265
    %287 = vmatpush.msra.mxu0 %v264
    %288 = vmatmul.f32.gmra.mxu0 %v55
    %v289 = vpop.f32.mrf.mxu0
    %v290 = vadd.f32 %v270, %v289
    %291 = vdwg.mxu0
    %v292 = vadd.f32 %v263, %v290
    %v293 = vxor.u32 %v292, 2147483648
    %v294 = vmul.f32 %v293, 1.442695
    %v295 = vpow.pop %v294
    %v296 = vadd.f32 %v295, 1.0
    %v297 = vrcp.pop %v296
    %v298 = vmul.f32 %v296, %v297
    %v299 = vsub.f32 1.0, %v298
    %v300 = vmul.f32 %v297, %v299
    %v301 = vadd.f32 %v297, %v300
    %vm302 = vweird.f32 %v296
    %vm303 = vweird.f32 %v297
    %vm304 = vmor %vm302, %vm303
    %v305 = vsel %vm304, %v297, %v301
    %v306 = vand.u32 2147483647, %v296
    %vm307 = vcmp.eq.f32.partialorder %v306, 8.507059e+37
    %v308 = vand.u32 %v296, 2147483648
    %v309 = vor.u32 1.1754944e-38, %v308
    %v310 = vsel %vm307, %v309, %v305
    %v311 = vmul.f32 1.0, %v310
    %s312 = scalar_lea.vmem %s6, 16
    %v313 = vld [vmem:[%s312] sm:$0xff]
    %v314 = vld [vmem:[%s312 + $0x8] sm:$0xff]
    %s315 = scalar_lea.vmem %s7, 64
    %v316 = vld [vmem:[%s315] sm:$0xff]
    %v317 = vld [vmem:[%s315 + $0x8] sm:$0xff]
    %v318 = vld [vmem:[%s315 + $0x10] sm:$0xff]
    %v319 = vld [vmem:[%s315 + $0x18] sm:$0xff]
    %v320 = vld [vmem:[%s315 + $0x20] sm:$0xff]
    %v321 = vld [vmem:[%s315 + $0x28] sm:$0xff]
    %v322 = vld [vmem:[%s315 + $0x30] sm:$0xff]
    %v323 = vld [vmem:[%s315 + $0x38] sm:$0xff]
    %324 = vmatpush.msra.mxu0 0.0
    %325 = vmatpush.msra.mxu0 0.0
    %326 = vmatpush.msra.mxu0 0.0
    %327 = vmatpush.msra.mxu0 0.0
    %328 = vmatpush.msra.mxu0 0.0
    %329 = vmatpush.msra.mxu0 0.0
    %330 = vmatpush.msra.mxu0 0.0
    %331 = vmatpush.msra.mxu0 0.0
    %332 = vmatpush.msra.mxu0 %v323
    %333 = vmatpush.msra.mxu0 %v322
    %334 = vmatpush.msra.mxu0 %v321
    %335 = vmatpush.msra.mxu0 %v320
    %336 = vmatpush.msra.mxu0 %v319
    %337 = vmatpush.msra.mxu0 %v318
    %338 = vmatpush.msra.mxu0 %v317
    %339 = vmatpush.msra.mxu0 %v316
    %340 = vmatmul.f32.gmra.mxu0 %v213
    %v341 = vpop.f32.mrf.mxu0
    %v342 = vadd.f32 0.0, %v341
    %343 = vdwg.mxu0
    %344 = vmatpush.msra.mxu0 0.0
    %345 = vmatpush.msra.mxu0 0.0
    %346 = vmatpush.msra.mxu0 0.0
    %347 = vmatpush.msra.mxu0 0.0
    %348 = vmatpush.msra.mxu0 0.0
    %349 = vmatpush.msra.mxu0 0.0
    %350 = vmatpush.msra.mxu0 0.0
    %351 = vmatpush.msra.mxu0 0.0
    %352 = vmatpush.msra.mxu0 0.0
    %353 = vmatpush.msra.mxu0 0.0
    %354 = vmatpush.msra.mxu0 0.0
    %355 = vmatpush.msra.mxu0 0.0
    %356 = vmatpush.msra.mxu0 0.0
    %357 = vmatpush.msra.mxu0 0.0
    %358 = vmatpush.msra.mxu0 %v314
    %359 = vmatpush.msra.mxu0 %v313
    %360 = vmatmul.f32.gmra.mxu0 %v237
    %v361 = vpop.f32.mrf.mxu0
    %v362 = vadd.f32 %v342, %v361
    %363 = vdwg.mxu0
    %s364 = scalar_lea.vmem %s9, 1
    %v365 = vld [vmem:[%s364] sm:$0x1]
    %v367 = vperm.slane %v365, 0
    %v369 = vadd.f32 %v362, %v367
    %s370 = scalar_lea.vmem %s8, 32
    %v371 = vld [vmem:[%s370] sm:$0xff]
    %v372 = vld [vmem:[%s370 + $0x8] sm:$0xff]
    %v373 = vld [vmem:[%s370 + $0x10] sm:$0xff]
    %v374 = vld [vmem:[%s370 + $0x18] sm:$0xff]
    %s375 = scalar_lea.vmem %s10, 1
    %v376 = vld [vmem:[%s375] sm:$0x1]
    %v378 = vperm.slane %v376, 0
    %380 = vmatpush.msra.mxu0 0.0
    %381 = vmatpush.msra.mxu0 0.0
    %382 = vmatpush.msra.mxu0 0.0
    %383 = vmatpush.msra.mxu0 0.0
    %384 = vmatpush.msra.mxu0 0.0
    %385 = vmatpush.msra.mxu0 0.0
    %386 = vmatpush.msra.mxu0 0.0
    %387 = vmatpush.msra.mxu0 0.0
    %388 = vmatpush.msra.mxu0 0.0
    %389 = vmatpush.msra.mxu0 0.0
    %390 = vmatpush.msra.mxu0 0.0
    %391 = vmatpush.msra.mxu0 0.0
    %392 = vmatpush.msra.mxu0 %v374
    %393 = vmatpush.msra.mxu0 %v373
    %394 = vmatpush.msra.mxu0 %v372
    %395 = vmatpush.msra.mxu0 %v371
    %396 = vmatmul.f32.gmra.mxu0 %v55
    %v397 = vpop.f32.mrf.mxu0
    %v398 = vadd.f32 %v378, %v397
    %399 = vdwg.mxu0
    %v400 = vadd.f32 %v369, %v398
    %v401 = vxor.u32 %v400, 2147483648
    %v402 = vmul.f32 %v401, 1.442695
    %v403 = vpow.pop %v402
    %v404 = vadd.f32 %v403, 1.0
    %v405 = vrcp.pop %v404
    %v406 = vmul.f32 %v404, %v405
    %v407 = vsub.f32 1.0, %v406
    %v408 = vmul.f32 %v405, %v407
    %v409 = vadd.f32 %v405, %v408
    %vm410 = vweird.f32 %v404
    %vm411 = vweird.f32 %v405
    %vm412 = vmor %vm410, %vm411
    %v413 = vsel %vm412, %v405, %v409
    %v414 = vand.u32 2147483647, %v404
    %vm415 = vcmp.eq.f32.partialorder %v414, 8.507059e+37
    %v416 = vand.u32 %v404, 2147483648
    %v417 = vor.u32 1.1754944e-38, %v416
    %v418 = vsel %vm415, %v417, %v413
    %v419 = vmul.f32 1.0, %v418
    %s420 = scalar_lea.vmem %s6, 32
    %v421 = vld [vmem:[%s420] sm:$0xff]
    %v422 = vld [vmem:[%s420 + $0x8] sm:$0xff]
    %s423 = scalar_lea.vmem %s7, 128
    %v424 = vld [vmem:[%s423] sm:$0xff]
    %v425 = vld [vmem:[%s423 + $0x8] sm:$0xff]
    %v426 = vld [vmem:[%s423 + $0x10] sm:$0xff]
    %v427 = vld [vmem:[%s423 + $0x18] sm:$0xff]
    %v428 = vld [vmem:[%s423 + $0x20] sm:$0xff]
    %v429 = vld [vmem:[%s423 + $0x28] sm:$0xff]
    %v430 = vld [vmem:[%s423 + $0x30] sm:$0xff]
    %v431 = vld [vmem:[%s423 + $0x38] sm:$0xff]
    %432 = vmatpush.msra.mxu0 0.0
    %433 = vmatpush.msra.mxu0 0.0
    %434 = vmatpush.msra.mxu0 0.0
    %435 = vmatpush.msra.mxu0 0.0
    %436 = vmatpush.msra.mxu0 0.0
    %437 = vmatpush.msra.mxu0 0.0
    %438 = vmatpush.msra.mxu0 0.0
    %439 = vmatpush.msra.mxu0 0.0
    %440 = vmatpush.msra.mxu0 %v431
    %441 = vmatpush.msra.mxu0 %v430
    %442 = vmatpush.msra.mxu0 %v429
    %443 = vmatpush.msra.mxu0 %v428
    %444 = vmatpush.msra.mxu0 %v427
    %445 = vmatpush.msra.mxu0 %v426
    %446 = vmatpush.msra.mxu0 %v425
    %447 = vmatpush.msra.mxu0 %v424
    %448 = vmatmul.f32.gmra.mxu0 %v213
    %v449 = vpop.f32.mrf.mxu0
    %v450 = vadd.f32 0.0, %v449
    %451 = vdwg.mxu0
    %452 = vmatpush.msra.mxu0 0.0
    %453 = vmatpush.msra.mxu0 0.0
    %454 = vmatpush.msra.mxu0 0.0
    %455 = vmatpush.msra.mxu0 0.0
    %456 = vmatpush.msra.mxu0 0.0
    %457 = vmatpush.msra.mxu0 0.0
    %458 = vmatpush.msra.mxu0 0.0
    %459 = vmatpush.msra.mxu0 0.0
    %460 = vmatpush.msra.mxu0 0.0
    %461 = vmatpush.msra.mxu0 0.0
    %462 = vmatpush.msra.mxu0 0.0
    %463 = vmatpush.msra.mxu0 0.0
    %464 = vmatpush.msra.mxu0 0.0
    %465 = vmatpush.msra.mxu0 0.0
    %466 = vmatpush.msra.mxu0 %v422
    %467 = vmatpush.msra.mxu0 %v421
    %468 = vmatmul.f32.gmra.mxu0 %v237
    %v469 = vpop.f32.mrf.mxu0
    %v470 = vadd.f32 %v450, %v469
    %471 = vdwg.mxu0
    %s472 = scalar_lea.vmem %s9, 2
    %v473 = vld [vmem:[%s472] sm:$0x1]
    %v475 = vperm.slane %v473, 0
    %v477 = vadd.f32 %v470, %v475
    %s478 = scalar_lea.vmem %s8, 64
    %v479 = vld [vmem:[%s478] sm:$0xff]
    %v480 = vld [vmem:[%s478 + $0x8] sm:$0xff]
    %v481 = vld [vmem:[%s478 + $0x10] sm:$0xff]
    %v482 = vld [vmem:[%s478 + $0x18] sm:$0xff]
    %s483 = scalar_lea.vmem %s10, 2
    %v484 = vld [vmem:[%s483] sm:$0x1]
    %v486 = vperm.slane %v484, 0
    %488 = vmatpush.msra.mxu0 0.0
    %489 = vmatpush.msra.mxu0 0.0
    %490 = vmatpush.msra.mxu0 0.0
    %491 = vmatpush.msra.mxu0 0.0
    %492 = vmatpush.msra.mxu0 0.0
    %493 = vmatpush.msra.mxu0 0.0
    %494 = vmatpush.msra.mxu0 0.0
    %495 = vmatpush.msra.mxu0 0.0
    %496 = vmatpush.msra.mxu0 0.0
    %497 = vmatpush.msra.mxu0 0.0
    %498 = vmatpush.msra.mxu0 0.0
    %499 = vmatpush.msra.mxu0 0.0
    %500 = vmatpush.msra.mxu0 %v482
    %501 = vmatpush.msra.mxu0 %v481
    %502 = vmatpush.msra.mxu0 %v480
    %503 = vmatpush.msra.mxu0 %v479
    %504 = vmatmul.f32.gmra.mxu0 %v55
    %v505 = vpop.f32.mrf.mxu0
    %v506 = vadd.f32 %v486, %v505
    %507 = vdwg.mxu0
    %v508 = vmul.f32 %v311, %v506
    %v509 = vadd.f32 %v477, %v508
    %v510 = vtanh.pop %v509
    %v511 = vsub.f32 1.0, %v419
    %v512 = vmul.f32 %v511, %v510
    %v513 = vmul.f32 %v419, %v44
    %v514 = vadd.f32 %v512, %v513
    %vm515 = vcmask 254976
    %516 = vst.msk [vmem:[#allocation2] sm:$0x3] %vm515, %v514
    %v517 = vperm.slane %v176, %v102
    %v518 = vperm.slane %v181, %v102
    %v519 = vsel %vm105, %v518, %v517
    %521 = vst.msk [vmem:[#allocation4] sm:$0x3] %vm108, %v519
    %vm523 = vcmask 517120
    %524 = vst.msk [vmem:[#allocation6] sm:$0x3] %vm523, %v212
    // Predicated region
    $region46: #{tpu_custom_call.1} parent=1 // pred_check
      _
    $region47: #{tpu_custom_call.1} parent=1 // pred_check_branch
      %526 = sbr.rel (0) target = $region49
    $region48: #{tpu_custom_call.1} parent=1 // pred_region
      %528 = vsyncadd [#allocation3], 0
      %s530 = sshll.u32 [#allocation2], 4
      %s531 = int_to_ptr.vmem [resolvable:$true] %s530
      %s532 = sshll.u32 %s11, 4
      %s533 = int_to_ptr.hbm [resolvable:$true] %s532
      %535 = dma.vmem_to_hbm [thread:$0]  %s531, 32, %s533, [#allocation3]
    $region49: #{tpu_custom_call.1} parent=1 // pred_fallthru
      _
    // Predicated region
    $region50: #{tpu_custom_call.1} parent=1 // pred_check
      _
    $region51: #{tpu_custom_call.1} parent=1 // pred_check_branch
      %537 = sbr.rel (0) target = $region53
    $region52: #{tpu_custom_call.1} parent=1 // pred_region
      %539 = vsyncadd [#allocation5], 0
      %s541 = sshll.u32 [#allocation4], 4
      %s542 = int_to_ptr.vmem [resolvable:$true] %s541
      %s543 = sshll.u32 %s12, 4
      %s544 = int_to_ptr.hbm [resolvable:$true] %s543
      %546 = dma.vmem_to_hbm [thread:$0]  %s542, 32, %s544, [#allocation5]
    $region53: #{tpu_custom_call.1} parent=1 // pred_fallthru
      _
    // Predicated region
    $region54: #{tpu_custom_call.1} parent=1 // pred_check
      _
    $region55: #{tpu_custom_call.1} parent=1 // pred_check_branch
      %548 = sbr.rel (0) target = $region57
    $region56: #{tpu_custom_call.1} parent=1 // pred_region
      %550 = vsyncadd [#allocation5], 0
      %s552 = sshll.u32 [#allocation6], 4
      %s553 = int_to_ptr.vmem [resolvable:$true] %s552
      %s554 = sshll.u32 %s13, 4
      %s555 = int_to_ptr.hbm [resolvable:$true] %s554
      %557 = dma.vmem_to_hbm [thread:$0]  %s553, 32, %s555, [#allocation5]
    $region57: #{tpu_custom_call.1} parent=1 // pred_fallthru
      _
    // Predicated region
    $region58: #{tpu_custom_call.1} parent=1 // pred_check
      _
    $region59: #{tpu_custom_call.1} parent=1 // pred_check_branch
      %559 = sbr.rel (0) target = $region61
    $region60: #{tpu_custom_call.1} parent=1 // pred_region
      %561 = dma.done [#allocation3], 32
    $region61: #{tpu_custom_call.1} parent=1 // pred_fallthru
      _
    // Predicated region
    $region62: #{tpu_custom_call.1} parent=1 // pred_check
      _
    $region63: #{tpu_custom_call.1} parent=1 // pred_check_branch
      %563 = sbr.rel (0) target = $region65
    $region64: #{tpu_custom_call.1} parent=1 // pred_region
      %565 = dma.done [#allocation5], 32
    $region65: #{tpu_custom_call.1} parent=1 // pred_fallthru
      _
    // Predicated region
    $region66: #{tpu_custom_call.1} parent=1 // pred_check
      _
    $region67: #{tpu_custom_call.1} parent=1 // pred_check_branch
      %567 = sbr.rel (0) target = $region69
    $region68: #{tpu_custom_call.1} parent=1 // pred_region
      %569 = dma.done [#allocation5], 32
    $region69: #{tpu_custom_call.1} parent=1 // pred_fallthru
      _
    %570 = vsyncpa [#allocation3], 1
    %571 = vsyncpa [#allocation5], 1

</llo_original>
